<compile_context>
chip_gen: v5e
topology: v5e:2x2
jax: 0.10.0
libtpu: 0.0.40
codegen_flags: <defaults>
</compile_context>

<pallas_src>
import functools

import numpy as np
import jax
import jax.numpy as jnp
from jax.experimental import pallas as pl
from jax.experimental.pallas import tpu as pltpu


# --------------------------- Pallas kernel -----------------------------------

def _assemble_prompts_kernel(*refs, n_ctx, class_specific, has_perm):
    """Writes one (class_tile, seq, dim) output block.

    prefix_ref: (tc, 1, D)      suffix_ref: (tc, s_suf, D)   out_ref: (tc, seq, D)
    ctx_ref:    (tc, n_ctx, D)  if class_specific else (n_ctx, D)
    perm_ref:   (tc, seq, seq)  one-hot row-permutation (only 'middle'/'front')
    """
    if has_perm:
        prefix_ref, ctx_ref, suffix_ref, perm_ref, out_ref = refs
    else:
        prefix_ref, ctx_ref, suffix_ref, out_ref = refs
        perm_ref = None

    prefix = prefix_ref[...]                                    # (tc, 1, D)
    suffix = suffix_ref[...]                                    # (tc, s_suf, D)
    if class_specific:
        ctx = ctx_ref[...]                                      # (tc, n_ctx, D)
    else:
        tc = prefix.shape[0]
        ctx = jnp.broadcast_to(ctx_ref[...][None],
                               (tc, n_ctx, ctx_ref.shape[-1]))  # broadcast over classes

    if perm_ref is None:
        # 'end': straight assembly, three lane-dense stores.
        out_ref[:, 0:1, :] = prefix
        out_ref[:, 1:1 + n_ctx, :] = ctx
        out_ref[:, 1 + n_ctx:, :] = suffix
    else:
        # 'middle'/'front': assemble canonical layout in registers, then apply
        # the static per-class token permutation as a one-hot MXU matmul
        # (exact: each output row is 1*x + 0*rest). Keeps the permuted result
        # the only thing written to HBM.
        canon = jnp.concatenate([prefix, ctx, suffix], axis=1).astype(jnp.float32)
        permuted = jnp.einsum('csk,ckd->csd', perm_ref[...], canon,
                              preferred_element_type=jnp.float32)
        out_ref[...] = permuted.astype(out_ref.dtype)


# --------------------------- tiling helpers -----------------------------------

def _auto_class_tile(n_ctx, s_suf, seq, dim, itemsize, class_specific, has_perm,
                     vmem_budget=8 * 1024 * 1024):
    """Largest class tile whose (double-buffered) blocks fit a VMEM budget."""
    per_cls = (1 + s_suf + seq) * dim * itemsize          # prefix + suffix + out
    if class_specific:
        per_cls += n_ctx * dim * itemsize
    if has_perm:
        per_cls += seq * seq * 4
    per_cls *= 2                                          # double buffering
    fixed = 0 if class_specific else 2 * n_ctx * dim * itemsize
    t = (vmem_budget - fixed) // per_cls
    return int(max(1, min(t, 256)))


def _choose_class_tile(n_cls, max_tc):
    """Return (tile, class_padding). Prefer an exact divisor; otherwise pad."""
    max_tc = max(1, min(n_cls, max_tc))
    best_div = 1
    for t in range(max_tc, 0, -1):
        if n_cls % t == 0:
            best_div = t
            break
    if best_div * 2 >= max_tc:            # divisor is "good enough" -> no padding
        return best_div, 0
    tc = max_tc
    return tc, (-n_cls) % tc


def _token_permutation(name_lens, n_ctx, seq, position):
    """Per-class token reorder (canonical 'end' layout -> 'middle'/'front')."""
    n_cls = len(name_lens)
    half = n_ctx // 2
    perm = np.zeros((n_cls, seq), dtype=np.int32)
    for i, nl in enumerate(name_lens):
        pre = [0]
        ctx_rows = list(range(1, 1 + n_ctx))
        suf_rows = list(range(1 + n_ctx, seq))
        cls_rows, rest = suf_rows[:nl], suf_rows[nl:]
        if position == "middle":
            order = pre + ctx_rows[:half] + cls_rows + ctx_rows[half:] + rest
        elif position == "front":
            order = pre + cls_rows + ctx_rows + rest
        else:
            raise ValueError(position)
        perm[i] = np.asarray(order, dtype=np.int32)
    return perm


# --------------------------- wrapper ------------------------------------------

def prompt_matrix_forward(ctx, token_prefix, token_suffix, *, name_lens=None,
                          class_token_position="end", max_class_tile=None):
    """JAX/Pallas equivalent of PromptMatrixLearner.forward()."""
    n_block, n_cls, _, dim = token_prefix.shape
    n_ctx = ctx.shape[-2]
    s_suf = token_suffix.shape[2]
    seq = 1 + n_ctx + s_suf
    class_specific = ctx.ndim == 4            # CSC ctx: (n_block, n_cls, n_ctx, dim)
    out_dtype = token_prefix.dtype
    ctx = ctx.astype(out_dtype)

    has_perm = class_token_position != "end"
    perm_onehot = None
    if has_perm:
        if class_token_position not in ("middle", "front"):
            raise ValueError(class_token_position)
        if name_lens is None:
            raise ValueError("name_lens required for 'middle'/'front'")
        # name_lens are Python ints (tokenizer output) -> static permutation.
        perm_idx = _token_permutation(name_lens, n_ctx, seq, class_token_position)
        perm_onehot = np.zeros((n_cls, seq, seq), dtype=np.float32)
        perm_onehot[np.arange(n_cls)[:, None],
                    np.arange(seq)[None, :], perm_idx] = 1.0

    if max_class_tile is None:
        max_class_tile = _auto_class_tile(n_ctx, s_suf, seq, dim,
                                          jnp.dtype(out_dtype).itemsize,
                                          class_specific, has_perm)
    tc, pad = _choose_class_tile(n_cls, max_class_tile)
    n_cls_p = n_cls + pad

    if pad:
        def pad_cls(x):
            cfg = [(0, 0)] * x.ndim
            cfg[1] = (0, pad)
            return jnp.pad(x, cfg)
        token_prefix = pad_cls(token_prefix)
        token_suffix = pad_cls(token_suffix)
        if class_specific:
            ctx = pad_cls(ctx)
        if perm_onehot is not None:
            perm_onehot = np.pad(perm_onehot, ((0, pad), (0, 0), (0, 0)))

    grid = (n_block, n_cls_p // tc)

    if class_specific:
        ctx_spec = pl.BlockSpec((None, tc, n_ctx, dim), lambda b, c: (b, c, 0, 0))
    else:
        # Generic ctx: block index ignores the class axis, so the ctx tile stays
        # resident in VMEM across consecutive class tiles of a block (no re-DMA).
        ctx_spec = pl.BlockSpec((None, n_ctx, dim), lambda b, c: (b, 0, 0))

    in_specs = [
        pl.BlockSpec((None, tc, 1, dim), lambda b, c: (b, c, 0, 0)),
        ctx_spec,
        pl.BlockSpec((None, tc, s_suf, dim), lambda b, c: (b, c, 0, 0)),
    ]
    inputs = [token_prefix, ctx, token_suffix]
    if has_perm:
        in_specs.append(pl.BlockSpec((tc, seq, seq), lambda b, c: (c, 0, 0)))
        inputs.append(jnp.asarray(perm_onehot))

    kern = functools.partial(_assemble_prompts_kernel, n_ctx=n_ctx,
                             class_specific=class_specific, has_perm=has_perm)
    out = pl.pallas_call(
        kern,
        out_shape=jax.ShapeDtypeStruct((n_block, n_cls_p, seq, dim), out_dtype),
        grid=grid,
        in_specs=in_specs,
        out_specs=pl.BlockSpec((None, tc, seq, dim), lambda b, c: (b, c, 0, 0)),
        compiler_params=pltpu.CompilerParams(
            dimension_semantics=("parallel", "parallel"),   # shard across TCs
        ),
    )(*inputs)

    if pad:
        out = out[:, :n_cls]
    return out


# --------------------------- pure-JAX reference -------------------------------

def reference_forward(ctx, prefix, suffix, name_lens, position):
    n_block, n_cls = prefix.shape[:2]
    if ctx.ndim == 3:                       # unsqueeze/expand/permute in PyTorch
        ctx = jnp.broadcast_to(ctx[:, None],
                               (n_block, n_cls, ctx.shape[1], ctx.shape[2]))
    n_ctx = ctx.shape[2]
    if position == "end":
        return jnp.concatenate([prefix, ctx, suffix], axis=2)
    half = n_ctx // 2
    outs = []
    for i in range(n_cls):
        nl = name_lens[i]
        p_i = prefix[:, i:i + 1]
        cls_i = suffix[:, i:i + 1, :nl]
        suf_i = suffix[:, i:i + 1, nl:]
        if position == "middle":
            parts = [p_i, ctx[:, i:i + 1, :half], cls_i, ctx[:, i:i + 1, half:], suf_i]
        elif position == "front":
            parts = [p_i, cls_i, ctx[:, i:i + 1], suf_i]
        else:
            raise ValueError(position)
        outs.append(jnp.concatenate(parts, axis=2))
    return jnp.concatenate(outs, axis=1)


# --------------------------- main ---------------------------------------------

if __name__ == "__main__":
    # Small shapes consistent with the module (real CLIP: seq=77, dim=512).
    n_block, n_cls, n_ctx, ctx_dim, seq = 2, 8, 4, 128, 16
    s_suf = seq - 1 - n_ctx

    key = jax.random.PRNGKey(0)
    k_ctx, k_pre, k_suf, k_csc = jax.random.split(key, 4)
    ctx = (0.02 * jax.random.normal(k_ctx, (n_block, n_ctx, ctx_dim))).astype(jnp.float32)
    token_prefix = (0.02 * jax.random.normal(
        k_pre, (n_block, n_cls, 1, ctx_dim))).astype(jnp.float32)
    token_suffix = (0.02 * jax.random.normal(
        k_suf, (n_block, n_cls, s_suf, ctx_dim))).astype(jnp.float32)
    name_lens = [1, 2, 3, 1, 2, 4, 1, 3]       # per-class tokenized name lengths

    def check(o, r):
        assert o.shape == r.shape, (o.shape, r.shape)
        assert float(jnp.max(jnp.abs(o - r))) == 0.0   # pure data movement: exact

    # --- default path: class token at the end ---
    out = jax.block_until_ready(
        prompt_matrix_forward(ctx, token_prefix, token_suffix,
                              name_lens=name_lens, class_token_position="end"))
    check(out, reference_forward(ctx, token_prefix, token_suffix, name_lens, "end"))

    # --- 'middle' / 'front' (permutation fused into the kernel via one-hot MXU) ---
    for pos in ("middle", "front"):
        o = jax.block_until_ready(
            prompt_matrix_forward(ctx, token_prefix, token_suffix,
                                  name_lens=name_lens, class_token_position=pos))
        check(o, reference_forward(ctx, token_prefix, token_suffix, name_lens, pos))

    # --- class-specific-context (CSC) variant: 4-D ctx ---
    ctx_csc = (0.02 * jax.random.normal(
        k_csc, (n_block, n_cls, n_ctx, ctx_dim))).astype(jnp.float32)
    o = jax.block_until_ready(
        prompt_matrix_forward(ctx_csc, token_prefix, token_suffix,
                              name_lens=name_lens, class_token_position="end"))
    check(o, reference_forward(ctx_csc, token_prefix, token_suffix, name_lens, "end"))

    # --- non-divisible class count -> class-axis padding path ---
    n_sub = 7
    pre7, suf7, nl7 = token_prefix[:, :n_sub], token_suffix[:, :n_sub], name_lens[:n_sub]
    for pos in ("end", "middle"):
        o = jax.block_until_ready(
            prompt_matrix_forward(ctx, pre7, suf7, name_lens=nl7,
                                  class_token_position=pos, max_class_tile=4))
        check(o, reference_forward(ctx, pre7, suf7, nl7, pos))

    print("KERNEL_OK")
</pallas_src>

<mosaic_0001>
module attributes {stable_mosaic.version = 11 : i64} {
  func.func @_assemble_prompts_kernel(%arg0: i32, %arg1: i32, %arg2: memref<1x8x1x128xf32, #tpu.memory_space<vmem>>, %arg3: memref<1x4x128xf32, #tpu.memory_space<vmem>>, %arg4: memref<1x8x11x128xf32, #tpu.memory_space<vmem>>, %arg5: memref<1x8x16x128xf32, #tpu.memory_space<vmem>>) attributes {dimension_semantics = [#tpu.dimension_semantics<parallel>, #tpu.dimension_semantics<parallel>], iteration_bounds = array<i64: 2, 1>, scalar_prefetch = 0 : i64, scratch_operands = 0 : i64, tpu.core_type = #tpu.core_type<tc>, window_params = [{transform_indices = @transform_0, window_bounds = array<i64: 1, 8, 1, 128>}, {transform_indices = @transform_1, window_bounds = array<i64: 1, 4, 128>}, {transform_indices = @transform_2, window_bounds = array<i64: 1, 8, 11, 128>}, {transform_indices = @transform_3, window_bounds = array<i64: 1, 8, 16, 128>}]} {
    %c0 = arith.constant 0 : index
    %c0_0 = arith.constant 0 : index
    %c0_1 = arith.constant 0 : index
    %c0_2 = arith.constant 0 : index
    %0 = vector.load %arg2[%c0, %c0_0, %c0_1, %c0_2] : memref<1x8x1x128xf32, #tpu.memory_space<vmem>>, vector<1x8x1x128xf32>
    %1 = vector.shape_cast %0 : vector<1x8x1x128xf32> to vector<8x1x128xf32>
    %c0_3 = arith.constant 0 : index
    %c0_4 = arith.constant 0 : index
    %c0_5 = arith.constant 0 : index
    %c0_6 = arith.constant 0 : index
    %2 = vector.load %arg4[%c0_3, %c0_4, %c0_5, %c0_6] : memref<1x8x11x128xf32, #tpu.memory_space<vmem>>, vector<1x8x11x128xf32>
    %3 = vector.shape_cast %2 : vector<1x8x11x128xf32> to vector<8x11x128xf32>
    %c0_7 = arith.constant 0 : index
    %c0_8 = arith.constant 0 : index
    %c0_9 = arith.constant 0 : index
    %4 = vector.load %arg3[%c0_7, %c0_8, %c0_9] : memref<1x4x128xf32, #tpu.memory_space<vmem>>, vector<1x4x128xf32>
    %5 = vector.shape_cast %4 : vector<1x4x128xf32> to vector<4x128xf32>
    %6 = vector.shape_cast %5 : vector<4x128xf32> to vector<1x4x128xf32>
    %7 = vector.shape_cast %6 : vector<1x4x128xf32> to vector<1x4x128xf32>
    %8 = vector.broadcast %7 : vector<1x4x128xf32> to vector<8x4x128xf32>
    %c0_10 = arith.constant 0 : index
    %c0_11 = arith.constant 0 : index
    %c0_12 = arith.constant 0 : index
    %c0_13 = arith.constant 0 : index
    %9 = vector.load %arg5[%c0_10, %c0_11, %c0_12, %c0_13] : memref<1x8x16x128xf32, #tpu.memory_space<vmem>>, vector<1x8x1x128xf32>
    %10 = vector.shape_cast %9 : vector<1x8x1x128xf32> to vector<8x1x128xf32>
    %11 = vector.shape_cast %1 : vector<8x1x128xf32> to vector<1x8x1x128xf32>
    tpu.vector_store %arg5[%c0_10, %c0_11, %c0_12, %c0_13], %11 {strides = array<i32>} : memref<1x8x16x128xf32, #tpu.memory_space<vmem>>, vector<1x8x1x128xf32>,
    %c0_14 = arith.constant 0 : index
    %c0_15 = arith.constant 0 : index
    %c1 = arith.constant 1 : index
    %c0_16 = arith.constant 0 : index
    %12 = vector.load %arg5[%c0_14, %c0_15, %c1, %c0_16] : memref<1x8x16x128xf32, #tpu.memory_space<vmem>>, vector<1x8x4x128xf32>
    %13 = vector.shape_cast %12 : vector<1x8x4x128xf32> to vector<8x4x128xf32>
    %14 = vector.shape_cast %8 : vector<8x4x128xf32> to vector<1x8x4x128xf32>
    tpu.vector_store %arg5[%c0_14, %c0_15, %c1, %c0_16], %14 {strides = array<i32>} : memref<1x8x16x128xf32, #tpu.memory_space<vmem>>, vector<1x8x4x128xf32>,
    %c0_17 = arith.constant 0 : index
    %c0_18 = arith.constant 0 : index
    %c5 = arith.constant 5 : index
    %c0_19 = arith.constant 0 : index
    %15 = vector.load %arg5[%c0_17, %c0_18, %c5, %c0_19] : memref<1x8x16x128xf32, #tpu.memory_space<vmem>>, vector<1x8x11x128xf32>
    %16 = vector.shape_cast %15 : vector<1x8x11x128xf32> to vector<8x11x128xf32>
    %17 = vector.shape_cast %3 : vector<8x11x128xf32> to vector<1x8x11x128xf32>
    tpu.vector_store %arg5[%c0_17, %c0_18, %c5, %c0_19], %17 {strides = array<i32>} : memref<1x8x16x128xf32, #tpu.memory_space<vmem>>, vector<1x8x11x128xf32>,
    return
  }
  func.func @transform_0(%arg0: i32, %arg1: i32) -> (i32, i32, i32, i32) {
    %c0_i32 = arith.constant 0 : i32
    %c0_i32_0 = arith.constant 0 : i32
    %c0_i32_1 = arith.constant 0 : i32
    return %arg0, %arg1, %c0_i32, %c0_i32_0 : i32, i32, i32, i32
  }
  func.func @transform_1(%arg0: i32, %arg1: i32) -> (i32, i32, i32) {
    %c0_i32 = arith.constant 0 : i32
    %c0_i32_0 = arith.constant 0 : i32
    %c0_i32_1 = arith.constant 0 : i32
    return %arg0, %c0_i32, %c0_i32_0 : i32, i32, i32
  }
  func.func @transform_2(%arg0: i32, %arg1: i32) -> (i32, i32, i32, i32) {
    %c0_i32 = arith.constant 0 : i32
    %c0_i32_0 = arith.constant 0 : i32
    %c0_i32_1 = arith.constant 0 : i32
    return %arg0, %arg1, %c0_i32, %c0_i32_0 : i32, i32, i32, i32
  }
  func.func @transform_3(%arg0: i32, %arg1: i32) -> (i32, i32, i32, i32) {
    %c0_i32 = arith.constant 0 : i32
    %c0_i32_0 = arith.constant 0 : i32
    %c0_i32_1 = arith.constant 0 : i32
    return %arg0, %arg1, %c0_i32, %c0_i32_0 : i32, i32, i32, i32
  }
}

</mosaic_0001>

<llo_original>
// kernel: tpu_custom_call.1
$region0: #{tpu_custom_call.1}
  #allocation0 [shape = 'u32[]', space=smem, size = 0x4, offset = 0x4, fixed_abs, tag = 'smem constant byte address 0x4 - core index']
  #allocation1 [shape = 'u32[72,128]{1,0:T(1,128)}', space=vmem, size = 0x9000, scoped, tag = 'internal scratch']
  %s0 = inlined_call_operand.vmem [shape: f32[2,8,1,128], index: 0, kind: input, shape index: {}]
  %s1 = inlined_call_operand.vmem [shape: f32[2,4,128], index: 1, kind: input, shape index: {}]
  %s2 = inlined_call_operand.vmem [shape: f32[2,8,11,128], index: 2, kind: input, shape index: {}]
  %s3 = inlined_call_operand.hbm [shape: f32[2,8,16,128], index: 3, kind: output, shape index: {}]
  %s4 = sld [smem:[#allocation0]]
  $region45: #{tpu_custom_call.1} parent=0
    _
  %s6 = ssub.s32 1, %s4
  %s7 = scalar_select 0, %s6, %s4
  $region1: #{tpu_custom_call.1} parent=0
    #allocation2 [shape = 'u8[131072]{0}', space=vmem, size = 0x20000, scoped, tag = 'output window, operand 0']
    #allocation3 [shape = 's32[2]{0}', space=sflag, size = 0x8, scoped, tag = 'scoped memory for tpu_custom_call.1']
    %8 = vsyncpa [#allocation3], 0
    %s9 = scalar_lea.sflag [#allocation3], 1
    %10 = vsyncpa %s9, 0
    loop: start=0, step=1, limit=4
    $region2: #{tpu_custom_call.1} parent=1 // loop_pre_header
      _
    $region3: #{tpu_custom_call.1} parent=1 // loop_header
      %s12 = sphi 0, %s16
      %p13 = scmp.ge.s32.totalorder %s12, 4
      %s19 = sphi 0, %s31
      %s20 = sphi 0, %s27
      %s21 = sphi 0, %s19
      %s22 = sphi 0, %s20
      %s23 = sphi 0, %s21
      %s24 = sphi 0, %s22
      %s36 = sphi 0, %s38
      %s39 = sphi 0, %s36
      %s40 = sphi 0, %s39
      %s56 = sphi 0, %s40
      %s62 = sphi 0, %s64
      %s65 = sphi 0, %s62
      %s66 = sphi 0, %s65
      %s82 = sphi 0, %s66
      %s90 = sphi 0, %s92
      %s93 = sphi 0, %s90
      %s94 = sphi 0, %s93
      %s110 = sphi 0, %s94
      %s118 = sphi 0, %s120
      %s121 = sphi 0, %s118
      %s122 = sphi 0, %s121
      %s138 = sphi 0, %s122
    $region4: #{tpu_custom_call.1} parent=1 // loop_header_branch
      %15 = sbr.rel (%p13) target = $region8
    $region5: #{tpu_custom_call.1} parent=1 // loop_body
      %s17 = ssub.s32 %s12, 1
      %s18 = ssub.s32 %s12, 2
      %s25 = sadd.s32 1, %s20
      %p26 = scmp.ge.s32.totalorder %s25, 1
      %s27 = scalar_select %p26, 0, %s25
      %s28 = sadd.s32 1, %s19
      %s29 = scalar_select %p26, %s28, %s19
      %p30 = scmp.ge.s32.totalorder %s29, 2
      %s31 = scalar_select %p30, 0, %s29
      %s32 = ssub.s32 %s19, %s31
      %s33 = ssub.s32 %s20, %s27
      %s34 = sor.u32 %s32, %s33
      %p35 = scmp.eq.s32.totalorder %s34, 0
      %s37 = sadd.s32 %s36, 1
      %s38 = scalar_select %p35, %s36, %s37
      %p41 = pneg %p35
      %p42 = scmp.eq.s32.totalorder %s12, 1
      %p43 = por %p41, %p42
      %p44 = scmp.ne.s32.totalorder %s36, %s39
      %p45 = scmp.eq.s32.totalorder %s12, 0
      %p46 = por %p44, %p45
      %p47 = scmp.ne.s32.totalorder %s36, %s39
      %p48 = scmp.eq.s32.totalorder %s17, 1
      %p49 = por %p47, %p48
      %p50 = scmp.ne.s32.totalorder %s39, %s40
      %p51 = scmp.eq.s32.totalorder %s17, 0
      %p52 = por %p50, %p51
      %p53 = scmp.ne.s32.totalorder %s39, %s40
      %p54 = scmp.eq.s32.totalorder %s18, 1
      %p55 = por %p53, %p54
      %p57 = scmp.ne.s32.totalorder %s40, %s56
      %p58 = scmp.eq.s32.totalorder %s18, 0
      %p59 = por %p57, %p58
      %s60 = ssub.s32 %s19, %s31
      %p61 = scmp.eq.s32.totalorder %s60, 0
      %s63 = sadd.s32 %s62, 1
      %s64 = scalar_select %p61, %s62, %s63
      %p67 = pneg %p61
      %p68 = scmp.eq.s32.totalorder %s12, 1
      %p69 = por %p67, %p68
      %p70 = scmp.ne.s32.totalorder %s62, %s65
      %p71 = scmp.eq.s32.totalorder %s12, 0
      %p72 = por %p70, %p71
      %p73 = scmp.ne.s32.totalorder %s62, %s65
      %p74 = scmp.eq.s32.totalorder %s17, 1
      %p75 = por %p73, %p74
      %p76 = scmp.ne.s32.totalorder %s65, %s66
      %p77 = scmp.eq.s32.totalorder %s17, 0
      %p78 = por %p76, %p77
      %p79 = scmp.ne.s32.totalorder %s65, %s66
      %p80 = scmp.eq.s32.totalorder %s18, 1
      %p81 = por %p79, %p80
      %p83 = scmp.ne.s32.totalorder %s66, %s82
      %p84 = scmp.eq.s32.totalorder %s18, 0
      %p85 = por %p83, %p84
      %s86 = ssub.s32 %s19, %s31
      %s87 = ssub.s32 %s20, %s27
      %s88 = sor.u32 %s86, %s87
      %p89 = scmp.eq.s32.totalorder %s88, 0
      %s91 = sadd.s32 %s90, 1
      %s92 = scalar_select %p89, %s90, %s91
      %p95 = pneg %p89
      %p96 = scmp.eq.s32.totalorder %s12, 1
      %p97 = por %p95, %p96
      %p98 = scmp.ne.s32.totalorder %s90, %s93
      %p99 = scmp.eq.s32.totalorder %s12, 0
      %p100 = por %p98, %p99
      %p101 = scmp.ne.s32.totalorder %s90, %s93
      %p102 = scmp.eq.s32.totalorder %s17, 1
      %p103 = por %p101, %p102
      %p104 = scmp.ne.s32.totalorder %s93, %s94
      %p105 = scmp.eq.s32.totalorder %s17, 0
      %p106 = por %p104, %p105
      %p107 = scmp.ne.s32.totalorder %s93, %s94
      %p108 = scmp.eq.s32.totalorder %s18, 1
      %p109 = por %p107, %p108
      %p111 = scmp.ne.s32.totalorder %s94, %s110
      %p112 = scmp.eq.s32.totalorder %s18, 0
      %p113 = por %p111, %p112
      %s114 = ssub.s32 %s19, %s31
      %s115 = ssub.s32 %s20, %s27
      %s116 = sor.u32 %s114, %s115
      %p117 = scmp.eq.s32.totalorder %s116, 0
      %s119 = sadd.s32 %s118, 1
      %s120 = scalar_select %p117, %s118, %s119
      %p123 = pneg %p117
      %p124 = scmp.eq.s32.totalorder %s12, 1
      %p125 = por %p123, %p124
      %p126 = scmp.ne.s32.totalorder %s118, %s121
      %p127 = scmp.eq.s32.totalorder %s12, 0
      %p128 = por %p126, %p127
      %p129 = scmp.ne.s32.totalorder %s118, %s121
      %p130 = scmp.eq.s32.totalorder %s17, 1
      %p131 = por %p129, %p130
      %p132 = scmp.ne.s32.totalorder %s121, %s122
      %p133 = scmp.eq.s32.totalorder %s17, 0
      %p134 = por %p132, %p133
      %p135 = scmp.ne.s32.totalorder %s121, %s122
      %p136 = scmp.eq.s32.totalorder %s18, 1
      %p137 = por %p135, %p136
      %p139 = scmp.ne.s32.totalorder %s122, %s138
      %p140 = scmp.eq.s32.totalorder %s18, 0
      %p141 = por %p139, %p140
      %p142 = scmp.le.s32.totalorder 1, %s12
      %p143 = scmp.lt.s32.totalorder %s12, 3
      %p144 = pnand %p142, %p143
      %p145 = pneg %p144
      // Predicated region
      $region9: #{tpu_custom_call.1} parent=5 // pred_check
        _
      $region10: #{tpu_custom_call.1} parent=5 // pred_check_branch
        %147 = sbr.rel (%p144) target = $region12
      $region11: #{tpu_custom_call.1} parent=5 // pred_region
        %s148 = ssub.s32 %s12, 1
      $region12: #{tpu_custom_call.1} parent=5 // pred_fallthru
        _
      %p149 = scmp.lt.s32.totalorder %s12, 2
      // Predicated region
      $region13: #{tpu_custom_call.1} parent=5 // pred_check
        %p150 = pneg %p149
      $region14: #{tpu_custom_call.1} parent=5 // pred_check_branch
        %152 = sbr.rel (%p150) target = $region16
      $region15: #{tpu_custom_call.1} parent=5 // pred_region
        // Predicated region
        $region17: #{tpu_custom_call.1} parent=15 // pred_check
          %p153 = pneg %p46
        $region18: #{tpu_custom_call.1} parent=15 // pred_check_branch
          %155 = sbr.rel (%p153) target = $region20
        $region19: #{tpu_custom_call.1} parent=15 // pred_region
          %s156 = smul.u32 8, %s20
          %p157 = scmp.lt.s32.totalorder %s19, 1
          %s158 = scalar_select %p157, %s19, 1
          %p159 = scmp.lt.s32.totalorder %s156, 7
          %s160 = scalar_select %p159, %s156, 7
          %s161 = smul.addr %s158, 8
          %s162 = sadd.s32 %s160, %s161
          %s163 = scalar_lea.vmem %s0, %s162
          %s164 = smul.u32 8, %s20
        $region20: #{tpu_custom_call.1} parent=15 // pred_fallthru
          _
        // Predicated region
        $region21: #{tpu_custom_call.1} parent=15 // pred_check
          %p165 = pneg %p72
        $region22: #{tpu_custom_call.1} parent=15 // pred_check_branch
          %167 = sbr.rel (%p165) target = $region24
        $region23: #{tpu_custom_call.1} parent=15 // pred_region
          %p168 = scmp.lt.s32.totalorder %s19, 1
          %s169 = scalar_select %p168, %s19, 1
          %s170 = smul.addr %s169, 4
          %s171 = scalar_lea.vmem %s1, %s170
        $region24: #{tpu_custom_call.1} parent=15 // pred_fallthru
          _
        // Predicated region
        $region25: #{tpu_custom_call.1} parent=15 // pred_check
          %p172 = pneg %p100
        $region26: #{tpu_custom_call.1} parent=15 // pred_check_branch
          %174 = sbr.rel (%p172) target = $region28
        $region27: #{tpu_custom_call.1} parent=15 // pred_region
          %s175 = smul.u32 8, %s20
          %p176 = scmp.lt.s32.totalorder %s19, 1
          %s177 = scalar_select %p176, %s19, 1
          %p178 = scmp.lt.s32.totalorder %s175, 7
          %s179 = scalar_select %p178, %s175, 7
          %s180 = smul.addr %s179, 2
          %s181 = smul.addr %s177, 16
          %s182 = sadd.s32 %s180, %s181
          %s183 = smul.addr %s182, 8
          %s184 = scalar_lea.vmem %s2, %s183
          %s185 = smul.u32 8, %s20
        $region28: #{tpu_custom_call.1} parent=15 // pred_fallthru
          _
      $region16: #{tpu_custom_call.1} parent=5 // pred_fallthru
        _
      %p186 = scmp.le.s32.totalorder 1, %s12
      %p187 = scmp.lt.s32.totalorder %s12, 3
      %p188 = pnand %p186, %p187
      %p189 = pneg %p188
      // Predicated region
      $region29: #{tpu_custom_call.1} parent=5 // pred_check
        _
      $region30: #{tpu_custom_call.1} parent=5 // pred_check_branch
        %191 = sbr.rel (%p188) target = $region32
      $region31: #{tpu_custom_call.1} parent=5 // pred_region
        %s192 = ssub.s32 %s12, 1
        %s193 = smul.u32 8, %s22
        %p194 = scmp.lt.s32.totalorder %s21, 1
        %s195 = scalar_select %p194, %s21, 1
        %p196 = scmp.lt.s32.totalorder %s193, 7
        %s197 = scalar_select %p196, %s193, 7
        %s198 = smul.addr %s195, 8
        %s199 = sadd.s32 %s197, %s198
        %s200 = scalar_lea.vmem %s0, %s199
        %p201 = pneg %p52
        %p202 = pneg %p49
        %p203 = scmp.lt.s32.totalorder %s21, 1
        %s204 = scalar_select %p203, %s21, 1
        %s205 = smul.addr %s204, 4
        %s206 = scalar_lea.vmem %s1, %s205
        %p207 = pneg %p78
        %p208 = pneg %p75
        %s209 = smul.u32 8, %s22
        %p210 = scmp.lt.s32.totalorder %s21, 1
        %s211 = scalar_select %p210, %s21, 1
        %p212 = scmp.lt.s32.totalorder %s209, 7
        %s213 = scalar_select %p212, %s209, 7
        %s214 = smul.addr %s213, 2
        %s215 = smul.addr %s211, 16
        %s216 = sadd.s32 %s214, %s215
        %s217 = smul.addr %s216, 8
        %s218 = scalar_lea.vmem %s2, %s217
        %p219 = pneg %p106
        %p220 = pneg %p103
        %p221 = pneg %p134
        %p222 = pneg %p131
        %s223 = sand.u32 %s121, 1
        %s224 = scalar_lea.sflag [#allocation3], %s223
        %s225 = sand.u32 %s121, 1
        %s226 = smul.addr %s225, 128
        %s227 = scalar_lea.vmem [#allocation2], %s226
        %s228 = smul.u32 8, %s22
        %p229 = scmp.lt.s32.totalorder %s21, 1
        %s230 = scalar_select %p229, %s21, 1
        %p231 = scmp.lt.s32.totalorder %s228, 7
        %s232 = scalar_select %p231, %s228, 7
        %s233 = smul.addr %s230, 8
        %s234 = sadd.s32 %s232, %s233
        %s235 = scalar_lea.vmem %s0, %s234
        %s236 = smul.u32 8, %s22
        %p237 = scmp.lt.s32.totalorder %s21, 1
        %s238 = scalar_select %p237, %s21, 1
        %s239 = smul.addr %s238, 4
        %s240 = scalar_lea.vmem %s1, %s239
        %s241 = smul.u32 8, %s22
        %p242 = scmp.lt.s32.totalorder %s21, 1
        %s243 = scalar_select %p242, %s21, 1
        %p244 = scmp.lt.s32.totalorder %s241, 7
        %s245 = scalar_select %p244, %s241, 7
        %s246 = smul.addr %s245, 2
        %s247 = smul.addr %s243, 16
        %s248 = sadd.s32 %s246, %s247
        %s249 = smul.addr %s248, 8
        %s250 = scalar_lea.vmem %s2, %s249
        %s251 = smul.u32 8, %s22
        %s252 = smul.u32 8, %s22
        %v253 = vld [vmem:[%s235] sm:$0x1]
        %v254 = vld [vmem:[%s235 + $0x1] sm:$0x1]
        %v255 = vld [vmem:[%s235 + $0x2] sm:$0x1]
        %v256 = vld [vmem:[%s235 + $0x3] sm:$0x1]
        %v257 = vld [vmem:[%s235 + $0x4] sm:$0x1]
        %v258 = vld [vmem:[%s235 + $0x5] sm:$0x1]
        %v259 = vld [vmem:[%s235 + $0x6] sm:$0x1]
        %v260 = vld [vmem:[%s235 + $0x7] sm:$0x1]
        %v261 = vld [vmem:[%s250] sm:$0xff]
        %v262 = vld [vmem:[%s250 + $0x8] sm:$0x7]
        %v263 = vld [vmem:[%s250 + $0x10] sm:$0xff]
        %v264 = vld [vmem:[%s250 + $0x18] sm:$0x7]
        %v265 = vld [vmem:[%s250 + $0x20] sm:$0xff]
        %v266 = vld [vmem:[%s250 + $0x28] sm:$0x7]
        %v267 = vld [vmem:[%s250 + $0x30] sm:$0xff]
        %v268 = vld [vmem:[%s250 + $0x38] sm:$0x7]
        %v269 = vld [vmem:[%s250 + $0x40] sm:$0xff]
        %v270 = vld [vmem:[%s250 + $0x48] sm:$0x7]
        %v271 = vld [vmem:[%s250 + $0x50] sm:$0xff]
        %v272 = vld [vmem:[%s250 + $0x58] sm:$0x7]
        %v273 = vld [vmem:[%s250 + $0x60] sm:$0xff]
        %v274 = vld [vmem:[%s250 + $0x68] sm:$0x7]
        %v275 = vld [vmem:[%s250 + $0x70] sm:$0xff]
        %v276 = vld [vmem:[%s250 + $0x78] sm:$0x7]
        %v277 = vld [vmem:[%s240] sm:$0xf]
        %278 = vst [vmem:[%s227] sm:$0x1] %v253
        %279 = vst [vmem:[%s227 + $0x10] sm:$0x1] %v254
        %280 = vst [vmem:[%s227 + $0x20] sm:$0x1] %v255
        %281 = vst [vmem:[%s227 + $0x30] sm:$0x1] %v256
        %282 = vst [vmem:[%s227 + $0x40] sm:$0x1] %v257
        %283 = vst [vmem:[%s227 + $0x50] sm:$0x1] %v258
        %284 = vst [vmem:[%s227 + $0x60] sm:$0x1] %v259
        %285 = vst [vmem:[%s227 + $0x70] sm:$0x1] %v260
        %286 = vst [vmem:[%s227 + $0x1] sm:$0xf] %v277
        %287 = vst [vmem:[%s227 + $0x11] sm:$0xf] %v277
        %288 = vst [vmem:[%s227 + $0x21] sm:$0xf] %v277
        %289 = vst [vmem:[%s227 + $0x31] sm:$0xf] %v277
        %290 = vst [vmem:[%s227 + $0x41] sm:$0xf] %v277
        %291 = vst [vmem:[%s227 + $0x51] sm:$0xf] %v277
        %292 = vst [vmem:[%s227 + $0x61] sm:$0xf] %v277
        %293 = vst [vmem:[%s227 + $0x71] sm:$0xf] %v277
        %294 = vst [vmem:[%s227 + $0x5] sm:$0xff] %v261
        %295 = vst [vmem:[%s227 + $0xd] sm:$0x7] %v262
        %296 = vst [vmem:[%s227 + $0x15] sm:$0xff] %v263
        %297 = vst [vmem:[%s227 + $0x1d] sm:$0x7] %v264
        %298 = vst [vmem:[%s227 + $0x25] sm:$0xff] %v265
        %299 = vst [vmem:[%s227 + $0x2d] sm:$0x7] %v266
        %300 = vst [vmem:[%s227 + $0x35] sm:$0xff] %v267
        %301 = vst [vmem:[%s227 + $0x3d] sm:$0x7] %v268
        %302 = vst [vmem:[%s227 + $0x45] sm:$0xff] %v269
        %303 = vst [vmem:[%s227 + $0x4d] sm:$0x7] %v270
        %304 = vst [vmem:[%s227 + $0x55] sm:$0xff] %v271
        %305 = vst [vmem:[%s227 + $0x5d] sm:$0x7] %v272
        %306 = vst [vmem:[%s227 + $0x65] sm:$0xff] %v273
        %307 = vst [vmem:[%s227 + $0x6d] sm:$0x7] %v274
        %308 = vst [vmem:[%s227 + $0x75] sm:$0xff] %v275
        %309 = vst [vmem:[%s227 + $0x7d] sm:$0x7] %v276
        %s310 = sand.u32 %s121, 1
        %s311 = scalar_lea.sflag [#allocation3], %s310
        %s312 = sand.u32 %s121, 1
        %s313 = smul.addr %s312, 128
        %s314 = scalar_lea.vmem [#allocation2], %s313
        // Predicated region
        $region33: #{tpu_custom_call.1} parent=31 // pred_check
          %p315 = pneg %p131
        $region34: #{tpu_custom_call.1} parent=31 // pred_check_branch
          %317 = sbr.rel (%p315) target = $region36
        $region35: #{tpu_custom_call.1} parent=31 // pred_region
          %s318 = smul.u32 8, %s22
          %320 = vsyncadd %s311, 0
          %s321 = smul.addr %s318, 2
          %s322 = smul.addr %s21, 16
          %s323 = sadd.s32 %s321, %s322
          %s324 = smul.addr %s323, 8
          %s325 = scalar_lea.hbm %s3, %s324
          %s326 = sshll.u32 %s314, 4
          %s327 = int_to_ptr.vmem [resolvable:$true] %s326
          %s328 = sshll.u32 %s325, 4
          %s329 = int_to_ptr.hbm [resolvable:$true] %s328
          %334 = dma.vmem_to_hbm [thread:$0]  %s327, 2048, %s329, %s311, 128, 128, 8
        $region36: #{tpu_custom_call.1} parent=31 // pred_fallthru
          _
      $region32: #{tpu_custom_call.1} parent=5 // pred_fallthru
        _
      %p335 = scmp.le.s32.totalorder 2, %s12
      // Predicated region
      $region37: #{tpu_custom_call.1} parent=5 // pred_check
        %p336 = pneg %p335
      $region38: #{tpu_custom_call.1} parent=5 // pred_check_branch
        %338 = sbr.rel (%p336) target = $region40
      $region39: #{tpu_custom_call.1} parent=5 // pred_region
        %s339 = ssub.s32 %s12, 2
        // Predicated region
        $region41: #{tpu_custom_call.1} parent=39 // pred_check
          %p340 = pneg %p137
        $region42: #{tpu_custom_call.1} parent=39 // pred_check_branch
          %342 = sbr.rel (%p340) target = $region44
        $region43: #{tpu_custom_call.1} parent=39 // pred_region
          %s343 = sand.u32 %s122, 1
          %s344 = scalar_lea.sflag [#allocation3], %s343
          %s345 = sand.u32 %s122, 1
          %s346 = smul.addr %s345, 128
          %s347 = scalar_lea.vmem [#allocation2], %s346
          %349 = dma.done %s344, 2048
        $region44: #{tpu_custom_call.1} parent=39 // pred_fallthru
          _
      $region40: #{tpu_custom_call.1} parent=5 // pred_fallthru
        _
    $region6: #{tpu_custom_call.1} parent=1 // loop_footer
      %s16 = sadd.s32 1, %s12
    $region7: #{tpu_custom_call.1} parent=1 // loop_footer_branch
      %11 = sbr.rel target = $region3
    $region8: #{tpu_custom_call.1} parent=1 // loop_exit
      _
    %350 = vsyncpa [#allocation3], 1
    %s351 = scalar_lea.sflag [#allocation3], 1
    %352 = vsyncpa %s351, 1

</llo_original>
